<compile_context>
chip_gen: v7x
topology: tpu7x:2x2x1
jax: 0.10.0
libtpu: 0.0.40
codegen_flags: <defaults>
</compile_context>

<pallas_src>
import functools
import math

import jax
import jax.numpy as jnp
from jax import lax
from jax.experimental import pallas as pl
from jax.experimental.pallas import tpu as pltpu


def autopad(k, p=None, d=1):
    if d > 1:
        k = d * (k - 1) + 1 if isinstance(k, int) else [d * (x - 1) + 1 for x in k]
    if p is None:
        p = k // 2 if isinstance(k, int) else [x // 2 for x in k]
    return p


def _round_up(a, b):
    return ((a + b - 1) // b) * b


def _conv_bn_silu_kernel(w_ref, b_ref, xb_ref, xh_ref, o_ref, *, K, D, S, act):
    """One (batch, L-tile) grid step.

    w_ref : (C2, C1*K)     BN-scale-folded conv weight, im2col layout
    b_ref : (C2, 1)        folded BN bias (f32)
    xb_ref: (1, S, C1, T)  body of the phase-decomposed input window
    xh_ref: (1, S, C1, H)  right halo of the input window (next 128+ columns)
    o_ref : (1, C2, T)     output tile (BN + SiLU applied)
    """
    taps = []
    for t in range(K):                       # static unroll over kernel taps
        p_t = (t * D) % S                    # phase holding this tap
        o_t = (t * D) // S                   # column offset inside the phase
        if o_t == 0:
            tap = xb_ref[0, p_t]             # (C1, T)
        else:
            body = xb_ref[0, p_t, :, o_t:]   # (C1, T - o_t)
            halo = xh_ref[0, p_t, :, :o_t]   # (C1, o_t)
            tap = jnp.concatenate([body, halo], axis=-1)   # (C1, T)
        taps.append(tap)
    rhs = taps[0] if K == 1 else jnp.concatenate(taps, axis=0)   # (C1*K, T)

    # Single MXU contraction over C1*K, f32 accumulation.
    acc = jnp.dot(w_ref[...], rhs, preferred_element_type=jnp.float32)  # (C2,T)

    y = acc + b_ref[...]                     # BN bias (scale folded into w)
    if act:
        y = y * jax.nn.sigmoid(y)            # SiLU
    o_ref[0] = y.astype(o_ref.dtype)


def conv_bn_silu(x, weight, bn_gamma, bn_beta, bn_mean, bn_var, *,
                 k=1, s=1, p=None, g=1, d=1, eps=1e-5,
                 act=True, compute_dtype=None, max_l_tile=512):
    """Pallas implementation of Conv.forward (eval-mode BatchNorm + SiLU)."""
    assert g == 1  # TODO(synk): grouped conv (g > 1) not implemented in-kernel.
    N, C1, L = x.shape
    C2 = weight.shape[0]
    pad = autopad(k, p, d)

    # Real (strided) conv output length.
    L_out = (L + 2 * pad - d * (k - 1) - 1) // s + 1

    # Tile geometry.  o_max = max per-phase column offset over taps (halo size).
    o_max = ((k - 1) * d) // s
    H = _round_up(max(o_max, 1), 128)               # halo block (lane multiple)
    T = min(max_l_tile, _round_up(L_out, 128))      # output tile (lane dense)
    T = _round_up(T, H)
    num_l = -(-L_out // T)
    Lph = num_l * T + H                             # per-phase padded length

    # Pad x so every phase array has exactly Lph columns (left = conv padding,
    # right = conv padding + tile/halo rounding; extra zeros only feed output
    # columns that are sliced away below).
    right_pad = Lph * s - L - pad
    assert right_pad >= 0
    x_pad = jnp.pad(x, ((0, 0), (0, 0), (pad, right_pad)))

    # Phase decomposition: x_ph[n, r, c, q] = x_pad[n, c, q*s + r].
    if s == 1:
        x_ph = x_pad[:, None, :, :]
    else:
        x_ph = jnp.transpose(x_pad.reshape(N, C1, Lph, s), (0, 3, 1, 2))

    # Fold eval-mode BatchNorm: scale into the conv weight, bias kept separate.
    scale = bn_gamma.astype(jnp.float32) / jnp.sqrt(bn_var.astype(jnp.float32) + eps)
    w_folded = weight.astype(jnp.float32) * scale[:, None, None]
    bias = (bn_beta.astype(jnp.float32)
            - bn_mean.astype(jnp.float32) * scale).reshape(C2, 1)
    # im2col weight layout: column t*C1 + c1 multiplies tap t, channel c1.
    wmat = jnp.transpose(w_folded, (0, 2, 1)).reshape(C2, k * C1)

    if compute_dtype is not None:
        x_ph = x_ph.astype(compute_dtype)
        wmat = wmat.astype(compute_dtype)

    kernel = functools.partial(_conv_bn_silu_kernel, K=k, D=d, S=s, act=act)
    tpb = T // H    # halo blocks per output tile

    out = pl.pallas_call(
        kernel,
        out_shape=jax.ShapeDtypeStruct((N, C2, num_l * T), x.dtype),
        grid_spec=pltpu.PrefetchScalarGridSpec(
            num_scalar_prefetch=0,
            grid=(N, num_l),
            in_specs=[
                pl.BlockSpec((C2, k * C1), lambda n, l: (0, 0)),
                pl.BlockSpec((C2, 1), lambda n, l: (0, 0)),
                pl.BlockSpec((1, s, C1, T), lambda n, l: (n, 0, 0, l)),
                pl.BlockSpec((1, s, C1, H), lambda n, l: (n, 0, 0, (l + 1) * tpb)),
            ],
            out_specs=pl.BlockSpec((1, C2, T), lambda n, l: (n, 0, l)),
        ),
        compiler_params=pltpu.CompilerParams(
            dimension_semantics=("parallel", "parallel"),
            vmem_limit_bytes=32 * 1024 * 1024,
        ),
    )(wmat, bias, x_ph, x_ph)

    return out[:, :, :L_out]


def _reference(x, weight, bn_gamma, bn_beta, bn_mean, bn_var, *, k, s, p, d,
               eps=1e-5):
    pad = autopad(k, p, d)
    y = lax.conv_general_dilated(
        x.astype(jnp.float32), weight.astype(jnp.float32),
        window_strides=(s,), padding=[(pad, pad)], rhs_dilation=(d,),
        dimension_numbers=("NCH", "OIH", "NCH"))
    scale = bn_gamma / jnp.sqrt(bn_var + eps)
    bias = bn_beta - bn_mean * scale
    y = y * scale[None, :, None] + bias[None, :, None]
    return y * jax.nn.sigmoid(y)


if __name__ == "__main__":
    N, C1, C2, L = 2, 4, 8, 16

    key = jax.random.PRNGKey(0)
    kx, kw, kg, kb, km, kv = jax.random.split(key, 6)

    x = jax.random.normal(kx, (N, C1, L), dtype=jnp.float32)
    bn_gamma = 1.0 + 0.1 * jax.random.normal(kg, (C2,), dtype=jnp.float32)
    bn_beta = 0.1 * jax.random.normal(kb, (C2,), dtype=jnp.float32)
    bn_mean = 0.1 * jax.random.normal(km, (C2,), dtype=jnp.float32)
    bn_var = jnp.abs(1.0 + 0.1 * jax.random.normal(kv, (C2,), dtype=jnp.float32))

    configs = [
        dict(k=3, s=1, d=1),   # Conv(c1, c2, 3, 1): "same"-length output
        dict(k=1, s=1, d=1),   # pointwise conv
        dict(k=3, s=2, d=1),   # strided conv (in-kernel striding via phases)
        dict(k=3, s=1, d=2),   # dilated conv
    ]
    for cfg in configs:
        K = cfg["k"]
        bound = 1.0 / math.sqrt(C1 * K)
        weight = jax.random.uniform(kw, (C2, C1, K), minval=-bound,
                                    maxval=bound, dtype=jnp.float32)
        out = conv_bn_silu(x, weight, bn_gamma, bn_beta, bn_mean, bn_var,
                           k=K, s=cfg["s"], p=None, g=1, d=cfg["d"])
        out = jax.block_until_ready(out)
        ref = _reference(x, weight, bn_gamma, bn_beta, bn_mean, bn_var,
                         k=K, s=cfg["s"], p=None, d=cfg["d"])
        assert out.shape == ref.shape, (cfg, out.shape, ref.shape)
        err = float(jnp.max(jnp.abs(out - ref)))
        assert err < 1e-5, (cfg, err)

    # bf16 operands / f32 accumulation (MXU-friendly path on v6e / v7x).
    K = 3
    bound = 1.0 / math.sqrt(C1 * K)
    weight = jax.random.uniform(kw, (C2, C1, K), minval=-bound, maxval=bound,
                                dtype=jnp.float32)
    out_bf16 = conv_bn_silu(x, weight, bn_gamma, bn_beta, bn_mean, bn_var,
                            k=K, s=1, p=None, g=1, d=1,
                            compute_dtype=jnp.bfloat16)
    out_bf16 = jax.block_until_ready(out_bf16)
    ref = _reference(x, weight, bn_gamma, bn_beta, bn_mean, bn_var,
                     k=K, s=1, p=None, d=1)
    err_bf16 = float(jnp.max(jnp.abs(out_bf16 - ref)))
    assert err_bf16 < 3e-2, err_bf16

    print("KERNEL_OK")
</pallas_src>

<mosaic_0001>
module attributes {stable_mosaic.version = 11 : i64} {
  func.func @_conv_bn_silu_kernel(%arg0: i32, %arg1: i32, %arg2: memref<8x12xf32, #tpu.memory_space<vmem>>, %arg3: memref<8x1xf32, #tpu.memory_space<vmem>>, %arg4: memref<1x1x4x128xf32, #tpu.memory_space<vmem>>, %arg5: memref<1x1x4x128xf32, #tpu.memory_space<vmem>>, %arg6: memref<1x8x128xf32, #tpu.memory_space<vmem>>) attributes {dimension_semantics = [#tpu.dimension_semantics<parallel>, #tpu.dimension_semantics<parallel>], iteration_bounds = array<i64: 2, 1>, scalar_prefetch = 0 : i64, scratch_operands = 0 : i64, tpu.core_type = #tpu.core_type<tc>, window_params = [{pipeline_mode = #tpu.pipeline_mode<synchronous>, transform_indices = @transform_0, window_bounds = array<i64: 8, 12>}, {pipeline_mode = #tpu.pipeline_mode<synchronous>, transform_indices = @transform_1, window_bounds = array<i64: 8, 1>}, {transform_indices = @transform_2, window_bounds = array<i64: 1, 1, 4, 128>}, {transform_indices = @transform_3, window_bounds = array<i64: 1, 1, 4, 128>}, {transform_indices = @transform_4, window_bounds = array<i64: 1, 8, 128>}]} {
    %c0 = arith.constant 0 : index
    %c0_0 = arith.constant 0 : index
    %c0_1 = arith.constant 0 : index
    %c0_2 = arith.constant 0 : index
    %0 = vector.load %arg4[%c0, %c0_0, %c0_1, %c0_2] : memref<1x1x4x128xf32, #tpu.memory_space<vmem>>, vector<1x1x4x128xf32>
    %1 = vector.shape_cast %0 : vector<1x1x4x128xf32> to vector<4x128xf32>
    %c0_3 = arith.constant 0 : index
    %c0_4 = arith.constant 0 : index
    %c0_5 = arith.constant 0 : index
    %c1 = arith.constant 1 : index
    %2 = vector.load %arg4[%c0_3, %c0_4, %c0_5, %c1] : memref<1x1x4x128xf32, #tpu.memory_space<vmem>>, vector<1x1x4x127xf32>
    %3 = vector.shape_cast %2 : vector<1x1x4x127xf32> to vector<4x127xf32>
    %c0_6 = arith.constant 0 : index
    %c0_7 = arith.constant 0 : index
    %c0_8 = arith.constant 0 : index
    %c0_9 = arith.constant 0 : index
    %4 = vector.load %arg5[%c0_6, %c0_7, %c0_8, %c0_9] : memref<1x1x4x128xf32, #tpu.memory_space<vmem>>, vector<1x1x4x1xf32>
    %5 = vector.shape_cast %4 : vector<1x1x4x1xf32> to vector<4x1xf32>
    %6 = tpu.concatenate %3, %5 in 1 : vector<4x127xf32>, vector<4x1xf32> -> vector<4x128xf32>
    %c0_10 = arith.constant 0 : index
    %c0_11 = arith.constant 0 : index
    %c0_12 = arith.constant 0 : index
    %c2 = arith.constant 2 : index
    %7 = vector.load %arg4[%c0_10, %c0_11, %c0_12, %c2] : memref<1x1x4x128xf32, #tpu.memory_space<vmem>>, vector<1x1x4x126xf32>
    %8 = vector.shape_cast %7 : vector<1x1x4x126xf32> to vector<4x126xf32>
    %c0_13 = arith.constant 0 : index
    %c0_14 = arith.constant 0 : index
    %c0_15 = arith.constant 0 : index
    %c0_16 = arith.constant 0 : index
    %9 = vector.load %arg5[%c0_13, %c0_14, %c0_15, %c0_16] : memref<1x1x4x128xf32, #tpu.memory_space<vmem>>, vector<1x1x4x2xf32>
    %10 = vector.shape_cast %9 : vector<1x1x4x2xf32> to vector<4x2xf32>
    %11 = tpu.concatenate %8, %10 in 1 : vector<4x126xf32>, vector<4x2xf32> -> vector<4x128xf32>
    %12 = tpu.concatenate %1, %6, %11 in 0 : vector<4x128xf32>, vector<4x128xf32>, vector<4x128xf32> -> vector<12x128xf32>
    %c0_17 = arith.constant 0 : index
    %c0_18 = arith.constant 0 : index
    %13 = vector.load %arg2[%c0_17, %c0_18] : memref<8x12xf32, #tpu.memory_space<vmem>>, vector<8x12xf32>
    %cst = arith.constant dense<0.000000e+00> : vector<8x128xf32>
    %14 = tpu.matmul %13, %12, %cst {dimension_numbers = #tpu.dot_dimension_numbers<[1], [0], [0], [1], [0, 0, 1, 1], [], []>} : vector<8x12xf32>, vector<12x128xf32>, vector<8x128xf32> -> vector<8x128xf32>
    %c0_19 = arith.constant 0 : index
    %c0_20 = arith.constant 0 : index
    %15 = vector.load %arg3[%c0_19, %c0_20] : memref<8x1xf32, #tpu.memory_space<vmem>>, vector<8x1xf32>
    %16 = vector.broadcast %15 : vector<8x1xf32> to vector<8x128xf32>
    %17 = arith.addf %14, %16 : vector<8x128xf32>
    %18 = arith.negf %17 : vector<8x128xf32>
    %19 = math.exp %18 : vector<8x128xf32>
    %cst_21 = arith.constant 1.000000e+00 : f32
    %20 = vector.broadcast %cst_21 : f32 to vector<8x128xf32>
    %21 = arith.addf %20, %19 : vector<8x128xf32>
    %22 = arith.divf %20, %21 : vector<8x128xf32>
    %23 = arith.mulf %17, %22 : vector<8x128xf32>
    %c0_22 = arith.constant 0 : index
    %c0_23 = arith.constant 0 : index
    %c0_24 = arith.constant 0 : index
    %24 = vector.load %arg6[%c0_22, %c0_23, %c0_24] : memref<1x8x128xf32, #tpu.memory_space<vmem>>, vector<1x8x128xf32>
    %25 = vector.shape_cast %24 : vector<1x8x128xf32> to vector<8x128xf32>
    %26 = vector.shape_cast %23 : vector<8x128xf32> to vector<1x8x128xf32>
    tpu.vector_store %arg6[%c0_22, %c0_23, %c0_24], %26 {strides = array<i32>} : memref<1x8x128xf32, #tpu.memory_space<vmem>>, vector<1x8x128xf32>,
    return
  }
  func.func @transform_0(%arg0: i32, %arg1: i32) -> (i32, i32) {
    %c0_i32 = arith.constant 0 : i32
    %c0_i32_0 = arith.constant 0 : i32
    %c0_i32_1 = arith.constant 0 : i32
    return %c0_i32, %c0_i32_0 : i32, i32
  }
  func.func @transform_1(%arg0: i32, %arg1: i32) -> (i32, i32) {
    %c0_i32 = arith.constant 0 : i32
    %c0_i32_0 = arith.constant 0 : i32
    %c0_i32_1 = arith.constant 0 : i32
    return %c0_i32, %c0_i32_0 : i32, i32
  }
  func.func @transform_2(%arg0: i32, %arg1: i32) -> (i32, i32, i32, i32) {
    %c0_i32 = arith.constant 0 : i32
    %c0_i32_0 = arith.constant 0 : i32
    %c0_i32_1 = arith.constant 0 : i32
    return %arg0, %c0_i32, %c0_i32_0, %arg1 : i32, i32, i32, i32
  }
  func.func @transform_3(%arg0: i32, %arg1: i32) -> (i32, i32, i32, i32) {
    %c1_i32 = arith.constant 1 : i32
    %0 = arith.addi %arg1, %c1_i32 : i32
    %c1_i32_0 = arith.constant 1 : i32
    %1 = arith.muli %0, %c1_i32_0 : i32
    %c0_i32 = arith.constant 0 : i32
    %c0_i32_1 = arith.constant 0 : i32
    %c0_i32_2 = arith.constant 0 : i32
    return %arg0, %c0_i32, %c0_i32_1, %1 : i32, i32, i32, i32
  }
  func.func @transform_4(%arg0: i32, %arg1: i32) -> (i32, i32, i32) {
    %c0_i32 = arith.constant 0 : i32
    %c0_i32_0 = arith.constant 0 : i32
    return %arg0, %c0_i32, %arg1 : i32, i32, i32
  }
}

</mosaic_0001>

<llo_original>
// kernel: tpu_custom_call.1
$region0: #{tpu_custom_call.1}
  #allocation0 [shape = 'u32[]', space=smem, size = 0x4, offset = 0x4, fixed_abs, tag = 'smem constant byte address 0x4 - core index']
  #allocation1 [shape = 'u32[144,128]{1,0:T(1,128)}', space=vmem, size = 0x12000, scoped, tag = 'internal scratch']
  %s0 = inlined_call_operand.hbm [shape: f32[8,12], index: 0, kind: input, shape index: {}]
  %s1 = inlined_call_operand.vmem [shape: f32[8,1], index: 1, kind: input, shape index: {}]
  %s2 = inlined_call_operand.vmem [shape: f32[2,1,4,256], index: 2, kind: input, shape index: {}]
  %s3 = inlined_call_operand.hbm [shape: f32[2,1,4,256], index: 3, kind: input, shape index: {}]
  %s4 = inlined_call_operand.hbm [shape: f32[2,8,128], index: 4, kind: output, shape index: {}]
  %s5 = sld [smem:[#allocation0]]
  $region57: #{tpu_custom_call.1} parent=0
    _
  %s7 = ssub.s32 1, %s5
  %s8 = scalar_select 0, %s7, %s5
  $region1: #{tpu_custom_call.1} parent=0
    #allocation2 [shape = 'u8[4096]{0}', space=vmem, size = 0x1000, scoped, tag = 'input window, operand 0, single buffered']
    #allocation3 [shape = 's32[2]{0}', space=sflag, size = 0x8, scoped, tag = 'scoped memory for tpu_custom_call.1']
    #allocation4 [shape = 's32[2]{0}', space=sflag, size = 0x8, scoped, tag = 'scoped memory for tpu_custom_call.1']
    #allocation5 [shape = 'u8[4096]{0}', space=vmem, size = 0x1000, scoped, tag = 'input window, operand 3']
    #allocation6 [shape = 's32[2]{0}', space=sflag, size = 0x8, scoped, tag = 'scoped memory for tpu_custom_call.1']
    #allocation7 [shape = 'u8[8192]{0}', space=vmem, size = 0x2000, scoped, tag = 'output window, operand 0']
    %9 = vsyncpa [#allocation3], 0
    %10 = vsyncpa [#allocation6], 0
    %s11 = scalar_lea.sflag [#allocation6], 1
    %12 = vsyncpa %s11, 0
    %13 = vsyncpa [#allocation4], 0
    %s14 = scalar_lea.sflag [#allocation4], 1
    %15 = vsyncpa %s14, 0
    loop: start=0, step=1, limit=4
    $region2: #{tpu_custom_call.1} parent=1 // loop_pre_header
      _
    $region3: #{tpu_custom_call.1} parent=1 // loop_header
      %s17 = sphi 0, %s21
      %p18 = scmp.ge.s32.totalorder %s17, 4
      %s24 = sphi 0, %s36
      %s25 = sphi 0, %s32
      %s26 = sphi 0, %s24
      %s27 = sphi 0, %s25
      %s28 = sphi 0, %s26
      %s29 = sphi 0, %s27
      %s37 = sphi 0, %s37
      %s39 = sphi 0, %s37
      %s40 = sphi 0, %s39
      %s54 = sphi 0, %s40
      %s58 = sphi 0, %s58
      %s60 = sphi 0, %s58
      %s61 = sphi 0, %s60
      %s75 = sphi 0, %s61
      %s83 = sphi 0, %s85
      %s86 = sphi 0, %s83
      %s87 = sphi 0, %s86
      %s103 = sphi 0, %s87
      %s113 = sphi 0, %s115
      %s116 = sphi 0, %s113
      %s117 = sphi 0, %s116
      %s133 = sphi 0, %s117
      %s141 = sphi 0, %s143
      %s144 = sphi 0, %s141
      %s145 = sphi 0, %s144
      %s161 = sphi 0, %s145
    $region4: #{tpu_custom_call.1} parent=1 // loop_header_branch
      %20 = sbr.rel (%p18) target = $region8
    $region5: #{tpu_custom_call.1} parent=1 // loop_body
      %s22 = ssub.s32 %s17, 1
      %s23 = ssub.s32 %s17, 2
      %s30 = sadd.s32 1, %s25
      %p31 = scmp.ge.s32.totalorder %s30, 1
      %s32 = scalar_select %p31, 0, %s30
      %s33 = sadd.s32 1, %s24
      %s34 = scalar_select %p31, %s33, %s24
      %p35 = scmp.ge.s32.totalorder %s34, 2
      %s36 = scalar_select %p35, 0, %s34
      %s38 = sadd.s32 %s37, 1
      %p41 = scmp.eq.s32.totalorder %s17, 1
      %p42 = scmp.ne.s32.totalorder %s37, %s39
      %p43 = scmp.eq.s32.totalorder %s17, 0
      %p44 = por %p42, %p43
      %p45 = scmp.ne.s32.totalorder %s37, %s39
      %p46 = scmp.eq.s32.totalorder %s22, 1
      %p47 = por %p45, %p46
      %p48 = scmp.ne.s32.totalorder %s39, %s40
      %p49 = scmp.eq.s32.totalorder %s22, 0
      %p50 = por %p48, %p49
      %p51 = scmp.ne.s32.totalorder %s39, %s40
      %p52 = scmp.eq.s32.totalorder %s23, 1
      %p53 = por %p51, %p52
      %p55 = scmp.ne.s32.totalorder %s40, %s54
      %p56 = scmp.eq.s32.totalorder %s23, 0
      %p57 = por %p55, %p56
      %s59 = sadd.s32 %s58, 1
      %p62 = scmp.eq.s32.totalorder %s17, 1
      %p63 = scmp.ne.s32.totalorder %s58, %s60
      %p64 = scmp.eq.s32.totalorder %s17, 0
      %p65 = por %p63, %p64
      %p66 = scmp.ne.s32.totalorder %s58, %s60
      %p67 = scmp.eq.s32.totalorder %s22, 1
      %p68 = por %p66, %p67
      %p69 = scmp.ne.s32.totalorder %s60, %s61
      %p70 = scmp.eq.s32.totalorder %s22, 0
      %p71 = por %p69, %p70
      %p72 = scmp.ne.s32.totalorder %s60, %s61
      %p73 = scmp.eq.s32.totalorder %s23, 1
      %p74 = por %p72, %p73
      %p76 = scmp.ne.s32.totalorder %s61, %s75
      %p77 = scmp.eq.s32.totalorder %s23, 0
      %p78 = por %p76, %p77
      %s79 = ssub.s32 %s24, %s36
      %s80 = ssub.s32 %s25, %s32
      %s81 = sor.u32 %s79, %s80
      %p82 = scmp.eq.s32.totalorder %s81, 0
      %s84 = sadd.s32 %s83, 1
      %s85 = scalar_select %p82, %s83, %s84
      %p88 = pneg %p82
      %p89 = scmp.eq.s32.totalorder %s17, 1
      %p90 = por %p88, %p89
      %p91 = scmp.ne.s32.totalorder %s83, %s86
      %p92 = scmp.eq.s32.totalorder %s17, 0
      %p93 = por %p91, %p92
      %p94 = scmp.ne.s32.totalorder %s83, %s86
      %p95 = scmp.eq.s32.totalorder %s22, 1
      %p96 = por %p94, %p95
      %p97 = scmp.ne.s32.totalorder %s86, %s87
      %p98 = scmp.eq.s32.totalorder %s22, 0
      %p99 = por %p97, %p98
      %p100 = scmp.ne.s32.totalorder %s86, %s87
      %p101 = scmp.eq.s32.totalorder %s23, 1
      %p102 = por %p100, %p101
      %p104 = scmp.ne.s32.totalorder %s87, %s103
      %p105 = scmp.eq.s32.totalorder %s23, 0
      %p106 = por %p104, %p105
      %s107 = sadd.s32 %s25, 1
      %s108 = sadd.s32 %s32, 1
      %s109 = ssub.s32 %s24, %s36
      %s110 = ssub.s32 %s107, %s108
      %s111 = sor.u32 %s109, %s110
      %p112 = scmp.eq.s32.totalorder %s111, 0
      %s114 = sadd.s32 %s113, 1
      %s115 = scalar_select %p112, %s113, %s114
      %p118 = pneg %p112
      %p119 = scmp.eq.s32.totalorder %s17, 1
      %p120 = por %p118, %p119
      %p121 = scmp.ne.s32.totalorder %s113, %s116
      %p122 = scmp.eq.s32.totalorder %s17, 0
      %p123 = por %p121, %p122
      %p124 = scmp.ne.s32.totalorder %s113, %s116
      %p125 = scmp.eq.s32.totalorder %s22, 1
      %p126 = por %p124, %p125
      %p127 = scmp.ne.s32.totalorder %s116, %s117
      %p128 = scmp.eq.s32.totalorder %s22, 0
      %p129 = por %p127, %p128
      %p130 = scmp.ne.s32.totalorder %s116, %s117
      %p131 = scmp.eq.s32.totalorder %s23, 1
      %p132 = por %p130, %p131
      %p134 = scmp.ne.s32.totalorder %s117, %s133
      %p135 = scmp.eq.s32.totalorder %s23, 0
      %p136 = por %p134, %p135
      %s137 = ssub.s32 %s24, %s36
      %s138 = ssub.s32 %s25, %s32
      %s139 = sor.u32 %s137, %s138
      %p140 = scmp.eq.s32.totalorder %s139, 0
      %s142 = sadd.s32 %s141, 1
      %s143 = scalar_select %p140, %s141, %s142
      %p146 = pneg %p140
      %p147 = scmp.eq.s32.totalorder %s17, 1
      %p148 = por %p146, %p147
      %p149 = scmp.ne.s32.totalorder %s141, %s144
      %p150 = scmp.eq.s32.totalorder %s17, 0
      %p151 = por %p149, %p150
      %p152 = scmp.ne.s32.totalorder %s141, %s144
      %p153 = scmp.eq.s32.totalorder %s22, 1
      %p154 = por %p152, %p153
      %p155 = scmp.ne.s32.totalorder %s144, %s145
      %p156 = scmp.eq.s32.totalorder %s22, 0
      %p157 = por %p155, %p156
      %p158 = scmp.ne.s32.totalorder %s144, %s145
      %p159 = scmp.eq.s32.totalorder %s23, 1
      %p160 = por %p158, %p159
      %p162 = scmp.ne.s32.totalorder %s145, %s161
      %p163 = scmp.eq.s32.totalorder %s23, 0
      %p164 = por %p162, %p163
      %p165 = scmp.le.s32.totalorder 1, %s17
      %p166 = scmp.lt.s32.totalorder %s17, 3
      %p167 = pnand %p165, %p166
      %p168 = pneg %p167
      // Predicated region
      $region9: #{tpu_custom_call.1} parent=5 // pred_check
        _
      $region10: #{tpu_custom_call.1} parent=5 // pred_check_branch
        %170 = sbr.rel (%p167) target = $region12
      $region11: #{tpu_custom_call.1} parent=5 // pred_region
        %s171 = ssub.s32 %s17, 1
        // Predicated region
        $region13: #{tpu_custom_call.1} parent=11 // pred_check
          %p172 = pneg %p50
        $region14: #{tpu_custom_call.1} parent=11 // pred_check_branch
          %174 = sbr.rel (%p172) target = $region16
        $region15: #{tpu_custom_call.1} parent=11 // pred_region
          %s176 = ssub.s32 128, 128
          %177 = vsyncadd [#allocation3], %s176
          %s179 = sshll.u32 [#allocation2], 4
          %s180 = int_to_ptr.vmem [resolvable:$true] %s179
          %182 = dma.hbm_to_vmem [thread:$0]  %s0, 128, %s180, [#allocation3]
        $region16: #{tpu_custom_call.1} parent=11 // pred_fallthru
          _
        // Predicated region
        $region17: #{tpu_custom_call.1} parent=11 // pred_check
          %p183 = pneg %p71
        $region18: #{tpu_custom_call.1} parent=11 // pred_check_branch
          %185 = sbr.rel (%p183) target = $region20
        $region19: #{tpu_custom_call.1} parent=11 // pred_region
          _
        $region20: #{tpu_custom_call.1} parent=11 // pred_fallthru
          _
      $region12: #{tpu_custom_call.1} parent=5 // pred_fallthru
        _
      %p186 = scmp.lt.s32.totalorder %s17, 2
      // Predicated region
      $region21: #{tpu_custom_call.1} parent=5 // pred_check
        %p187 = pneg %p186
      $region22: #{tpu_custom_call.1} parent=5 // pred_check_branch
        %189 = sbr.rel (%p187) target = $region24
      $region23: #{tpu_custom_call.1} parent=5 // pred_region
        // Predicated region
        $region25: #{tpu_custom_call.1} parent=23 // pred_check
          %p190 = pneg %p93
        $region26: #{tpu_custom_call.1} parent=23 // pred_check_branch
          %192 = sbr.rel (%p190) target = $region28
        $region27: #{tpu_custom_call.1} parent=23 // pred_region
          %p193 = scmp.lt.s32.totalorder %s24, 1
          %s194 = scalar_select %p193, %s24, 1
          %p195 = scmp.lt.s32.totalorder %s25, 1
          %s196 = scalar_select %p195, %s25, 1
          %s197 = smul.addr %s194, 2
          %s198 = sadd.s32 %s196, %s197
          %s199 = smul.addr %s198, 4
          %s200 = scalar_lea.vmem %s2, %s199
        $region28: #{tpu_custom_call.1} parent=23 // pred_fallthru
          _
        // Predicated region
        $region29: #{tpu_custom_call.1} parent=23 // pred_check
          %p201 = pneg %p123
        $region30: #{tpu_custom_call.1} parent=23 // pred_check_branch
          %203 = sbr.rel (%p201) target = $region32
        $region31: #{tpu_custom_call.1} parent=23 // pred_region
          %s204 = sand.u32 %s113, 1
          %s205 = scalar_lea.sflag [#allocation6], %s204
          %s206 = sand.u32 %s113, 1
          %s207 = smul.addr %s206, 4
          %s208 = scalar_lea.vmem [#allocation5], %s207
          %s209 = sadd.s32 %s25, 1
          %s211 = ssub.s32 64, 64
          %212 = vsyncadd %s205, %s211
          %s213 = smul.addr %s24, 2
          %s214 = sadd.s32 %s209, %s213
          %s215 = smul.addr %s214, 64
          %s216 = scalar_lea.hbm %s3, %s215
          %s218 = sshll.u32 %s208, 4
          %s219 = int_to_ptr.vmem [resolvable:$true] %s218
          %221 = dma.hbm_to_vmem [thread:$0]  %s216, 64, %s219, %s205
        $region32: #{tpu_custom_call.1} parent=23 // pred_fallthru
          _
      $region24: #{tpu_custom_call.1} parent=5 // pred_fallthru
        _
      %p222 = scmp.le.s32.totalorder 1, %s17
      %p223 = scmp.lt.s32.totalorder %s17, 3
      %p224 = pnand %p222, %p223
      %p225 = pneg %p224
      // Predicated region
      $region33: #{tpu_custom_call.1} parent=5 // pred_check
        _
      $region34: #{tpu_custom_call.1} parent=5 // pred_check_branch
        %227 = sbr.rel (%p224) target = $region36
      $region35: #{tpu_custom_call.1} parent=5 // pred_region
        %s228 = ssub.s32 %s17, 1
        // Predicated region
        $region37: #{tpu_custom_call.1} parent=35 // pred_check
          %p229 = pneg %p50
        $region38: #{tpu_custom_call.1} parent=35 // pred_check_branch
          %231 = sbr.rel (%p229) target = $region40
        $region39: #{tpu_custom_call.1} parent=35 // pred_region
          %232 = dma.done [#allocation3], 128
        $region40: #{tpu_custom_call.1} parent=35 // pred_fallthru
          _
        %s233 = sand.u32 %s116, 1
        %s234 = scalar_lea.sflag [#allocation6], %s233
        %s235 = sand.u32 %s116, 1
        %s236 = smul.addr %s235, 4
        %s237 = scalar_lea.vmem [#allocation5], %s236
        // Predicated region
        $region41: #{tpu_custom_call.1} parent=35 // pred_check
          %p238 = pneg %p129
        $region42: #{tpu_custom_call.1} parent=35 // pred_check_branch
          %240 = sbr.rel (%p238) target = $region44
        $region43: #{tpu_custom_call.1} parent=35 // pred_region
          %241 = dma.done %s234, 64
        $region44: #{tpu_custom_call.1} parent=35 // pred_fallthru
          _
        %p242 = pneg %p50
        %p243 = pneg %p47
        %p244 = pneg %p71
        %p245 = pneg %p68
        %p246 = scmp.lt.s32.totalorder %s26, 1
        %s247 = scalar_select %p246, %s26, 1
        %p248 = scmp.lt.s32.totalorder %s27, 1
        %s249 = scalar_select %p248, %s27, 1
        %s250 = smul.addr %s247, 2
        %s251 = sadd.s32 %s249, %s250
        %s252 = smul.addr %s251, 4
        %s253 = scalar_lea.vmem %s2, %s252
        %p254 = pneg %p99
        %p255 = pneg %p96
        %s256 = sand.u32 %s116, 1
        %s257 = scalar_lea.sflag [#allocation6], %s256
        %s258 = sand.u32 %s116, 1
        %s259 = smul.addr %s258, 4
        %s260 = scalar_lea.vmem [#allocation5], %s259
        %p261 = pneg %p129
        %p262 = pneg %p126
        %p263 = pneg %p157
        %p264 = pneg %p154
        %s265 = sand.u32 %s144, 1
        %s266 = scalar_lea.sflag [#allocation4], %s265
        %s267 = sand.u32 %s144, 1
        %s268 = smul.addr %s267, 8
        %s269 = scalar_lea.vmem [#allocation7], %s268
        %p270 = scmp.lt.s32.totalorder %s26, 1
        %s271 = scalar_select %p270, %s26, 1
        %p272 = scmp.lt.s32.totalorder %s27, 1
        %s273 = scalar_select %p272, %s27, 1
        %s274 = smul.addr %s271, 2
        %s275 = sadd.s32 %s273, %s274
        %s276 = smul.addr %s275, 4
        %s277 = scalar_lea.vmem %s2, %s276
        %s278 = sadd.s32 %s27, 1
        %v279 = vld [vmem:[%s277] sm:$0xf]
        %v280 = vld [vmem:[%s237] sm:$0xf]
        %282 = vrot.lane.b32.xlu0 %v279, 127
        %v283 = vpop.permute.xlu0 %282
        %286 = vrot.lane.b32.xlu0 %v280, 127
        %v287 = vpop.permute.xlu0 %286
        %vm289 = vcmask 1039360
        %v290 = vsel %vm289, %v283, %v287
        %291 = vrot.lane.b32.xlu0 %v279, 126
        %v292 = vpop.permute.xlu0 %291
        %294 = vrot.lane.b32.xlu0 %v280, 126
        %v295 = vpop.permute.xlu0 %294
        %vm297 = vcmask 1031168
        %v298 = vsel %vm297, %v292, %v295
        %v300 = vrot.slane %v290, 4
        %vm302 = vcmask 1043456
        %v303 = vsel %vm302, %v279, %v300
        %v304 = vld [vmem:[#allocation2] sm:$0xff]
        %v305 = vld [vmem:[%s1] sm:$0xff]
        %307 = vset.pattern.permute.xlu0 0
        %308 = vperm.xlu0 %307, %v305
        %v309 = vpop.permute.xlu0 %308
        %vm311 = vcmask 97280
        %v313 = vsel %vm311, %v304, 0
        %v316 = vsel %vm302, %v298, 0
        %318 = vmatprep.subr.mxu0 0.0
        %319 = vmatpush1.msra.mxu0 %v303
        %320 = vmatprep.subr.mxu0 0.0
        %321 = vmatpush1.msra.mxu0 %v316
        %322 = vmatprep.subr.mxu0 0.0
        %323 = vmatpush1.msra.mxu0 0.0
        %324 = vmatprep.subr.mxu0 0.0
        %325 = vmatpush1.msra.mxu0 0.0
        %326 = vmatprep.subr.mxu0 0.0
        %327 = vmatpush1.msra.mxu0 0.0
        %328 = vmatprep.subr.mxu0 0.0
        %329 = vmatpush1.msra.mxu0 0.0
        %330 = vmatprep.subr.mxu0 0.0
        %331 = vmatpush1.msra.mxu0 0.0
        %332 = vmatprep.subr.mxu0 0.0
        %333 = vmatpush1.msra.mxu0 0.0
        %334 = vmatprep.subr.mxu0 0.0
        %335 = vmatpush1.msra.mxu0 0.0
        %336 = vmatprep.subr.mxu0 0.0
        %337 = vmatpush1.msra.mxu0 0.0
        %338 = vmatprep.subr.mxu0 0.0
        %339 = vmatpush1.msra.mxu0 0.0
        %340 = vmatprep.subr.mxu0 0.0
        %341 = vmatpush1.msra.mxu0 0.0
        %342 = vmatprep.subr.mxu0 0.0
        %343 = vmatpush1.msra.mxu0 0.0
        %344 = vmatprep.subr.mxu0 0.0
        %345 = vmatpush1.msra.mxu0 0.0
        %346 = vmatprep.subr.mxu0 0.0
        %347 = vmatpush1.msra.mxu0 0.0
        %348 = vmatprep.subr.mxu0 0.0
        %349 = vmatpush1.msra.mxu0 0.0
        %350 = vmatprep.subr.mxu0 0.0
        %351 = vmatpush1.msra.mxu0 0.0
        %352 = vmatprep.subr.mxu0 0.0
        %353 = vmatpush1.msra.mxu0 0.0
        %354 = vmatprep.subr.mxu0 0.0
        %355 = vmatpush1.msra.mxu0 0.0
        %356 = vmatprep.subr.mxu0 0.0
        %357 = vmatpush1.msra.mxu0 0.0
        %358 = vmatprep.subr.mxu0 0.0
        %359 = vmatpush1.msra.mxu0 0.0
        %360 = vmatprep.subr.mxu0 0.0
        %361 = vmatpush1.msra.mxu0 0.0
        %362 = vmatprep.subr.mxu0 0.0
        %363 = vmatpush1.msra.mxu0 0.0
        %364 = vmatprep.subr.mxu0 0.0
        %365 = vmatpush1.msra.mxu0 0.0
        %366 = vmatprep.subr.mxu0 0.0
        %367 = vmatpush1.msra.mxu0 0.0
        %368 = vmatprep.subr.mxu0 0.0
        %369 = vmatpush1.msra.mxu0 0.0
        %370 = vmatprep.subr.mxu0 0.0
        %371 = vmatpush1.msra.mxu0 0.0
        %372 = vmatprep.subr.mxu0 0.0
        %373 = vmatpush1.msra.mxu0 0.0
        %374 = vmatprep.subr.mxu0 0.0
        %375 = vmatpush1.msra.mxu0 0.0
        %376 = vmatprep.subr.mxu0 0.0
        %377 = vmatpush1.msra.mxu0 0.0
        %378 = vmatprep.subr.mxu0 0.0
        %379 = vmatpush1.msra.mxu0 0.0
        %380 = vmatprep.subr.mxu0 0.0
        %381 = vmatpush1.msra.mxu0 0.0
        %382 = vmatprep.mubr.f32.mxu0 0.0
        %383 = vmatmul.mubr.f32.gmra.mrb[0].mxu0 %v313
        %v384 = vpop.f32.mrb[0].mxu0
        %v385 = vadd.f32 %v309, %v384
        %v386 = vpop.f32.mrb[0].mxu0
        %387 = vdwg.mxu0
        %v388 = vxor.u32 %v385, 2147483648
        %v389 = vmul.f32 %v388, 1.442695
        %v390 = vpow.pop %v389
        %v391 = vadd.f32 %v390, 1.0
        %v392 = vrcp.pop %v391
        %v393 = vmul.f32 1.0, %v392
        %v394 = vmul.f32 %v385, %v393
        %395 = vst [vmem:[%s269] sm:$0xff] %v394
        %s396 = sand.u32 %s144, 1
        %s397 = scalar_lea.sflag [#allocation4], %s396
        %s398 = sand.u32 %s144, 1
        %s399 = smul.addr %s398, 8
        %s400 = scalar_lea.vmem [#allocation7], %s399
        // Predicated region
        $region45: #{tpu_custom_call.1} parent=35 // pred_check
          %p401 = pneg %p154
        $region46: #{tpu_custom_call.1} parent=35 // pred_check_branch
          %403 = sbr.rel (%p401) target = $region48
        $region47: #{tpu_custom_call.1} parent=35 // pred_region
          %s405 = ssub.s32 128, 128
          %406 = vsyncadd %s397, %s405
          %s407 = sadd.s32 %s27, %s26
          %s408 = smul.addr %s407, 128
          %s409 = scalar_lea.hbm %s4, %s408
          %s411 = sshll.u32 %s400, 4
          %s412 = int_to_ptr.vmem [resolvable:$true] %s411
          %414 = dma.vmem_to_hbm [thread:$0]  %s412, 128, %s409, %s397
        $region48: #{tpu_custom_call.1} parent=35 // pred_fallthru
          _
      $region36: #{tpu_custom_call.1} parent=5 // pred_fallthru
        _
      %p415 = scmp.le.s32.totalorder 2, %s17
      // Predicated region
      $region49: #{tpu_custom_call.1} parent=5 // pred_check
        %p416 = pneg %p415
      $region50: #{tpu_custom_call.1} parent=5 // pred_check_branch
        %418 = sbr.rel (%p416) target = $region52
      $region51: #{tpu_custom_call.1} parent=5 // pred_region
        %s419 = ssub.s32 %s17, 2
        // Predicated region
        $region53: #{tpu_custom_call.1} parent=51 // pred_check
          %p420 = pneg %p160
        $region54: #{tpu_custom_call.1} parent=51 // pred_check_branch
          %422 = sbr.rel (%p420) target = $region56
        $region55: #{tpu_custom_call.1} parent=51 // pred_region
          %s423 = sand.u32 %s145, 1
          %s424 = scalar_lea.sflag [#allocation4], %s423
          %s425 = sand.u32 %s145, 1
          %s426 = smul.addr %s425, 8
          %s427 = scalar_lea.vmem [#allocation7], %s426
          %428 = dma.done %s424, 128
        $region56: #{tpu_custom_call.1} parent=51 // pred_fallthru
          _
      $region52: #{tpu_custom_call.1} parent=5 // pred_fallthru
        _
    $region6: #{tpu_custom_call.1} parent=1 // loop_footer
      %s21 = sadd.s32 1, %s17
    $region7: #{tpu_custom_call.1} parent=1 // loop_footer_branch
      %16 = sbr.rel target = $region3
    $region8: #{tpu_custom_call.1} parent=1 // loop_exit
      _
    %429 = vsyncpa [#allocation3], 1
    %s430 = scalar_lea.sflag [#allocation3], 1
    %431 = vsyncpa %s430, 1
    %432 = vsyncpa [#allocation6], 1
    %s433 = scalar_lea.sflag [#allocation6], 1
    %434 = vsyncpa %s433, 1
    %435 = vsyncpa [#allocation4], 1
    %s436 = scalar_lea.sflag [#allocation4], 1
    %437 = vsyncpa %s436, 1

</llo_original>
